<compile_context>
chip_gen: v6e
topology: v6e:2x2x1
jax: 0.10.0
libtpu: 0.0.40
codegen_flags: <defaults>
</compile_context>

<pallas_src>
import jax
import jax.numpy as jnp
import numpy as np
from jax.experimental import pallas as pl
from jax.experimental.pallas import tpu as pltpu


def _drop_path_kernel(mask_ref, x_ref, o_ref):
    """One tile of the per-sample broadcast multiply.

    mask_ref : VMEM (TB, 1)  f32 keep/scale factor per sample
    x_ref    : VMEM (TB, TF) input tile  (x dtype)
    o_ref    : VMEM (TB, TF) output tile (x dtype)
    """
    xf = x_ref[...].astype(jnp.float32)
    o_ref[...] = (xf * mask_ref[...]).astype(o_ref.dtype)


def _round_up(n: int, m: int) -> int:
    return ((n + m - 1) // m) * m


def drop_path_pallas(x, drop_prob: float = 0.0, training: bool = False,
                     scale_by_keep: bool = True, *, key=None,
                     force_pallas: bool = False, donate_x: bool = False):
    """Matches torch drop_path(x, drop_prob, training, scale_by_keep)."""
    if drop_prob == 0.0 or not training:
        return x
    if key is None:
        raise ValueError(
            "drop_path_pallas: a jax.random key is required when training with "
            "drop_prob > 0 (a fixed default key would repeat the drop pattern).")

    keep_prob = 1.0 - drop_prob
    B = x.shape[0]
    F = int(np.prod(x.shape[1:])) if x.ndim > 1 else 1
    itemsize = jnp.dtype(x.dtype).itemsize

    # Per-sample bernoulli(keep_prob) mask, pre-scaled, kept in f32.
    keep = jax.random.bernoulli(key, p=keep_prob, shape=(B,))
    scale = (1.0 / keep_prob) if (scale_by_keep and keep_prob > 0.0) else 1.0
    mask = (keep.astype(jnp.float32) * scale).reshape(B, 1)

    # Small-tensor fast path: launch + per-step overhead dominates below a few
    # hundred KiB; XLA fuses this broadcast-multiply perfectly well.
    if not force_pallas and B * F * itemsize <= (1 << 18):
        y = (x.reshape(B, F).astype(jnp.float32) * mask).astype(x.dtype)
        return y.reshape(x.shape)

    x2 = x.reshape(B, F)

    # Tile sizes: lane-dense F tiles (multiple of 128), sublane-aligned B tiles,
    # TF cap scaled by dtype so each tile is ~2 MiB.
    sublane = {4: 8, 2: 16, 1: 32}.get(itemsize, 8)
    tf_cap = {4: 2048, 2: 4096, 1: 8192}.get(itemsize, 2048)
    TB = min(256, _round_up(B, sublane))
    TF = min(tf_cap, _round_up(F, 128))

    # cdiv grid: Pallas masks the boundary blocks, no wrapper-side padding.
    nb = pl.cdiv(B, TB)
    nf = pl.cdiv(F, TF)
    grid = (nf, nb)  # F-block axis leading -> megacore split on v7x for small B

    out = pl.pallas_call(
        _drop_path_kernel,
        out_shape=jax.ShapeDtypeStruct((B, F), x.dtype),
        grid_spec=pltpu.PrefetchScalarGridSpec(
            num_scalar_prefetch=0,
            grid=grid,
            in_specs=[
                pl.BlockSpec((TB, 1), lambda jf, ib: (ib, 0)),    # per-sample mask
                pl.BlockSpec((TB, TF), lambda jf, ib: (ib, jf)),  # activation tile
            ],
            out_specs=pl.BlockSpec((TB, TF), lambda jf, ib: (ib, jf)),
        ),
        compiler_params=pltpu.CompilerParams(
            dimension_semantics=("parallel", "parallel")),
        cost_estimate=pl.CostEstimate(
            flops=B * F,
            transcendentals=0,
            bytes_accessed=2 * B * F * itemsize + B * 4),
        input_output_aliases=({1: 0} if donate_x else {}),
    )(mask, x2)

    return out.reshape(x.shape)


class DropPath:
    """JAX/Pallas port of the PyTorch DropPath module (forward only)."""

    def __init__(self, drop_prob: float = 0.0, scale_by_keep: bool = True):
        self.drop_prob = drop_prob
        self.scale_by_keep = scale_by_keep
        self.training = True  # torch modules default to training mode

    def __call__(self, x, key=None, force_pallas=False, donate_x=False):
        return drop_path_pallas(x, self.drop_prob, self.training,
                                self.scale_by_keep, key=key,
                                force_pallas=force_pallas, donate_x=donate_x)


def _check_samples(x_np, y_np, keep_prob):
    """Each sample must be either entirely zeroed or entirely scaled by 1/keep_prob."""
    for b in range(x_np.shape[0]):
        zeroed = np.allclose(y_np[b], 0.0)
        scaled = np.allclose(y_np[b], x_np[b] / keep_prob, rtol=2e-2, atol=2e-2)
        assert zeroed or scaled, f"sample {b}: neither dropped nor scaled-kept"


def _to_f32_np(a):
    return np.asarray(jnp.asarray(a).astype(jnp.float32))


if __name__ == "__main__":
    root = jax.random.PRNGKey(0)
    k1, k2, k3, k4, k5, k6 = jax.random.split(root, 6)

    keep_prob = 0.7
    mod = DropPath(drop_prob=0.3, scale_by_keep=True)

    # 1) Small GPT-style token activations (batch, seq, hidden); force the
    #    Pallas path -> exercises boundary blocks along the batch axis.
    x1 = jax.random.normal(k1, (2, 8, 32), dtype=jnp.float32)
    y1 = jax.block_until_ready(mod(x1, key=k2, force_pallas=True))
    _check_samples(_to_f32_np(x1).reshape(2, -1),
                   _to_f32_np(y1).reshape(2, -1), keep_prob)

    # Fast path (no kernel) with the same key must match the kernel output.
    y1_fast = jax.block_until_ready(mod(x1, key=k2))
    assert np.allclose(np.asarray(y1), np.asarray(y1_fast))

    # 2) Non-divisible F -> multi-tile grid with masked boundary writes.
    x2 = jax.random.normal(k3, (4, 3, 1000), dtype=jnp.float32)
    y2 = jax.block_until_ready(mod(x2, key=k4, force_pallas=True))
    _check_samples(_to_f32_np(x2).reshape(4, -1),
                   _to_f32_np(y2).reshape(4, -1), keep_prob)

    # 3) bf16 activations with the f32 mask path (scale not truncated).
    x3 = jax.random.normal(k5, (4, 8, 512), dtype=jnp.bfloat16)
    y3 = jax.block_until_ready(mod(x3, key=k6, force_pallas=True))
    _check_samples(_to_f32_np(x3).reshape(4, -1),
                   _to_f32_np(y3).reshape(4, -1), keep_prob)

    # 4) eval mode / drop_prob == 0 -> identity (no kernel), matching torch.
    mod.training = False
    y_eval = jax.block_until_ready(mod(x1))
    assert np.allclose(np.asarray(y_eval), np.asarray(x1))

    print("KERNEL_OK")
</pallas_src>

<mosaic_0001>
module attributes {stable_mosaic.version = 11 : i64} {
  func.func @_drop_path_kernel(%arg0: i32, %arg1: i32, %arg2: memref<8x1xf32, #tpu.memory_space<vmem>>, %arg3: memref<8x256xf32, #tpu.memory_space<vmem>>, %arg4: memref<8x256xf32, #tpu.memory_space<vmem>>) attributes {dimension_semantics = [#tpu.dimension_semantics<parallel>, #tpu.dimension_semantics<parallel>], iteration_bounds = array<i64: 1, 1>, scalar_prefetch = 0 : i64, scratch_operands = 0 : i64, tpu.core_type = #tpu.core_type<tc>, window_params = [{transform_indices = @transform_0, window_bounds = array<i64: 8, 1>}, {transform_indices = @transform_1, window_bounds = array<i64: 8, 256>}, {transform_indices = @transform_2, window_bounds = array<i64: 8, 256>}]} {
    %c0 = arith.constant 0 : index
    %c0_0 = arith.constant 0 : index
    %0 = vector.load %arg3[%c0, %c0_0] : memref<8x256xf32, #tpu.memory_space<vmem>>, vector<8x256xf32>
    %c0_1 = arith.constant 0 : index
    %c0_2 = arith.constant 0 : index
    %1 = vector.load %arg2[%c0_1, %c0_2] : memref<8x1xf32, #tpu.memory_space<vmem>>, vector<8x1xf32>
    %2 = vector.broadcast %1 : vector<8x1xf32> to vector<8x256xf32>
    %3 = arith.mulf %0, %2 : vector<8x256xf32>
    %c0_3 = arith.constant 0 : index
    %c0_4 = arith.constant 0 : index
    %4 = vector.load %arg4[%c0_3, %c0_4] : memref<8x256xf32, #tpu.memory_space<vmem>>, vector<8x256xf32>
    tpu.vector_store %arg4[%c0_3, %c0_4], %3 {strides = array<i32>} : memref<8x256xf32, #tpu.memory_space<vmem>>, vector<8x256xf32>,
    return
  }
  func.func @transform_0(%arg0: i32, %arg1: i32) -> (i32, i32) {
    %c0_i32 = arith.constant 0 : i32
    %c0_i32_0 = arith.constant 0 : i32
    return %arg1, %c0_i32 : i32, i32
  }
  func.func @transform_1(%arg0: i32, %arg1: i32) -> (i32, i32) {
    %c0_i32 = arith.constant 0 : i32
    return %arg1, %arg0 : i32, i32
  }
  func.func @transform_2(%arg0: i32, %arg1: i32) -> (i32, i32) {
    %c0_i32 = arith.constant 0 : i32
    return %arg1, %arg0 : i32, i32
  }
}

</mosaic_0001>

<llo_original>
// kernel: tpu_custom_call.1
$region0: #{tpu_custom_call.1}
  #allocation0 [shape = 'u32[]', space=smem, size = 0x4, offset = 0x4, fixed_abs, tag = 'smem constant byte address 0x4 - core index']
  #allocation1 [shape = 'u32[144,128]{1,0:T(1,128)}', space=vmem, size = 0x12000, scoped, tag = 'internal scratch']
  %s0 = inlined_call_operand.vmem [shape: f32[2,1], index: 0, kind: input, shape index: {}]
  %s1 = inlined_call_operand.vmem [shape: f32[2,256], index: 1, kind: input, shape index: {}]
  %s2 = inlined_call_operand.hbm [shape: f32[2,256], index: 2, kind: output, shape index: {}]
  %s3 = sld [smem:[#allocation0]]
  $region18: #{tpu_custom_call.1} parent=0
    _
  %s5 = ssub.s32 1, %s3
  %s6 = scalar_select 0, %s5, %s3
  $region1: #{tpu_custom_call.1} parent=0
    #allocation2 [shape = 'u8[8192]{0}', space=vmem, size = 0x2000, scoped, tag = 'output window, operand 0, single buffered']
    #allocation3 [shape = 's32[1]{0}', space=sflag, size = 0x4, scoped, tag = 'scoped memory for tpu_custom_call.1']
    %7 = vsyncpa [#allocation3], 0
    // Predicated region
    $region2: #{tpu_custom_call.1} parent=1 // pred_check
      _
    $region3: #{tpu_custom_call.1} parent=1 // pred_check_branch
      %9 = sbr.rel (0) target = $region5
    $region4: #{tpu_custom_call.1} parent=1 // pred_region
      _
    $region5: #{tpu_custom_call.1} parent=1 // pred_fallthru
      _
    // Predicated region
    $region6: #{tpu_custom_call.1} parent=1 // pred_check
      _
    $region7: #{tpu_custom_call.1} parent=1 // pred_check_branch
      %11 = sbr.rel (0) target = $region9
    $region8: #{tpu_custom_call.1} parent=1 // pred_region
      _
    $region9: #{tpu_custom_call.1} parent=1 // pred_fallthru
      _
    %v12 = vld [vmem:[%s1] sm:$0xf]
    %v13 = vld [vmem:[%s1 + $0x4] sm:$0xf]
    %v14 = vld [vmem:[%s1 + $0x8] sm:$0xf]
    %v15 = vld [vmem:[%s1 + $0xc] sm:$0xf]
    %v16 = vld [vmem:[%s0] sm:$0xff]
    %18 = vset.pattern.permute.xlu0 0
    %19 = vperm.xlu0 %18, %v16
    %v20 = vpop.permute.xlu0 %19
    %v22 = vunpack.c.l.s4 269488144
    %v23 = vunpack.c.0.s8 %v22
    %v24 = vlaneseq
    %v25 = vshrl.u32 %v24, 7
    %v26 = vsub.s32 %v23, %v25
    %v27 = vrot.slane %v20, %v26
    %v29 = vunpack.c.l.s4 842150450
    %v30 = vunpack.c.0.s8 %v29
    %v31 = vlaneseq
    %v32 = vshrl.u32 %v31, 7
    %v33 = vsub.s32 %v30, %v32
    %v34 = vrot.slane %v20, %v33
    %v36 = vunpack.c.l.s4 1414812756
    %v37 = vunpack.c.0.s8 %v36
    %v38 = vlaneseq
    %v39 = vshrl.u32 %v38, 7
    %v40 = vsub.s32 %v37, %v39
    %v41 = vrot.slane %v20, %v40
    %v43 = vunpack.c.l.s4 1987475062
    %v44 = vunpack.c.0.s8 %v43
    %v45 = vlaneseq
    %v46 = vshrl.u32 %v45, 7
    %v47 = vsub.s32 %v44, %v46
    %v48 = vrot.slane %v20, %v47
    %v53 = vmul.f32 %v12, %v27
    %v54 = vmul.f32 %v13, %v34
    %v55 = vmul.f32 %v14, %v41
    %v56 = vmul.f32 %v15, %v48
    %57 = vst [vmem:[#allocation2] sm:$0xf] %v53
    %58 = vst [vmem:[#allocation2 + $0x4] sm:$0xf] %v54
    %59 = vst [vmem:[#allocation2 + $0x8] sm:$0xf] %v55
    %60 = vst [vmem:[#allocation2 + $0xc] sm:$0xf] %v56
    // Predicated region
    $region10: #{tpu_custom_call.1} parent=1 // pred_check
      _
    $region11: #{tpu_custom_call.1} parent=1 // pred_check_branch
      %62 = sbr.rel (0) target = $region13
    $region12: #{tpu_custom_call.1} parent=1 // pred_region
      %s64 = ssub.s32 256, 64
      %65 = vsyncadd [#allocation3], %s64
      %s66 = sshll.u32 [#allocation2], 4
      %s67 = int_to_ptr.vmem [resolvable:$true] %s66
      %72 = dma.vmem_to_hbm [thread:$0]  %s67, 64, %s2, [#allocation3], 64, 64, 4
    $region13: #{tpu_custom_call.1} parent=1 // pred_fallthru
      _
    // Predicated region
    $region14: #{tpu_custom_call.1} parent=1 // pred_check
      _
    $region15: #{tpu_custom_call.1} parent=1 // pred_check_branch
      %74 = sbr.rel (0) target = $region17
    $region16: #{tpu_custom_call.1} parent=1 // pred_region
      %75 = dma.done [#allocation3], 256
    $region17: #{tpu_custom_call.1} parent=1 // pred_fallthru
      _
    %76 = vsyncpa [#allocation3], 1

</llo_original>
